<compile_context>
chip_gen: v6e
topology: v6e:2x2x1
jax: 0.10.0
libtpu: 0.0.40
codegen_flags: <defaults>
</compile_context>

<pallas_src>
import jax
import jax.numpy as jnp
from jax import lax
from jax.experimental import pallas as pl
from jax.experimental.pallas import tpu as pltpu

# ---- model hyper-parameters (small, consistent with the module) -------------
B = 2          # batch
CIN = 4        # nfilters_in
H = W = 8      # spatial -> state_plane_size = 64
S = H * W      # state_plane_size
CHEAD = 16     # chead
NOUT = 2       # nfilters_out
EPS = 1e-5     # BatchNorm eps


# ------------------------------- Pallas kernel -------------------------------
def policy_head_kernel(x_ref,      # (CIN, B*S)        channel-major, batch in lanes
                       slab_ref,   # (ROWS, 128)       packed params (see prepare_params)
                       pw3_ref,    # (NOUT, C, B*S)    pass_dense weights, batch-tiled
                       out_ref):   # (B, NOUT, S+1)    softmax policy (PyTorch layout)
    cin, lanes = x_ref.shape
    nout, c, _ = pw3_ref.shape
    batch, _, sp1 = out_ref.shape
    s = sp1 - 1
    # Kernel is specialised for B=2 (both batches share the 128-lane axis);
    # shapes are static, so this fires at trace time.
    assert batch == 2 and lanes == batch * s

    # ---- packed parameter views (static slices of one slab DMA) -------------
    wpg     = slab_ref[0:2 * c, 0:cin]                 # (2C,CIN) fused [P;G] conv, BN folded
    p_shift = slab_ref[0:c, cin:cin + 1]               # (C,1)
    g_shift = slab_ref[c:2 * c, cin:cin + 1]           # (C,1)
    dw      = slab_ref[2 * c:3 * c, 0:2 * c]           # (C,2C) dense, BN folded
    c2w     = slab_ref[3 * c:3 * c + nout, 0:c]        # (NOUT,C)
    passb   = slab_ref[3 * c:3 * c + nout, c:c + 1]    # (NOUT,1)

    x = x_ref[...]                                     # (CIN, 128)

    # ---- fused Pconv + Gconv: one MXU dot ------------------------------------
    pg = jnp.dot(wpg, x, preferred_element_type=jnp.float32)   # (2C, 128)
    g = jnp.maximum(pg[c:, :] + g_shift, 0.0)                  # (C, 128)

    # ---- per-batch pooled stats over 64-lane segments (mask trick) -----------
    lane_c = lax.broadcasted_iota(jnp.int32, (c, lanes), 1)
    seg0_c = lane_c < s                                        # batch-0 lanes
    g0 = jnp.where(seg0_c, g, 0.0)                             # g >= 0 (relu): 0-fill ok
    g1 = g - g0                                                # batch-1 lanes (exact)
    mean0 = jnp.sum(g0, axis=1, keepdims=True) * (1.0 / s)     # (C,1), divide by S not 128
    mean1 = jnp.sum(g1, axis=1, keepdims=True) * (1.0 / s)
    max0 = jnp.max(g0, axis=1, keepdims=True)
    max1 = jnp.max(g1, axis=1, keepdims=True)

    # Segmented lane-broadcast of pooled stats -> ONE dense dot for the biases.
    mean_b = jnp.where(seg0_c, mean0, mean1)                   # (C, 128)
    max_b = jnp.where(seg0_c, max0, max1)                      # (C, 128)
    pooled = jnp.concatenate([mean_b, max_b], axis=0)          # (2C, 128)
    bias = jnp.dot(dw, pooled, preferred_element_type=jnp.float32)  # (C, 128)

    # conv2(relu(bn2(p + biases)))  (bn2 folded into wpg / dw / p_shift).
    h = jnp.maximum(pg[:c, :] + bias + p_shift, 0.0)           # (C, 128)
    board = jnp.dot(c2w, h, preferred_element_type=jnp.float32)  # (NOUT, 128)

    # ---- pass_dense(flatten(g)): lane-dense VPU multiply, sublanes then lanes -
    prod = pw3_ref[...] * g[None, :, :]                        # (NOUT, C, 128)
    partial = jnp.sum(prod, axis=1)                            # (NOUT, 128)
    lane_n = lax.broadcasted_iota(jnp.int32, (nout, lanes), 1)
    seg0_n = lane_n < s
    part0 = jnp.where(seg0_n, partial, 0.0)
    pass0 = jnp.sum(part0, axis=1, keepdims=True) + passb      # (NOUT, 1)
    pass1 = jnp.sum(partial - part0, axis=1, keepdims=True) + passb

    # ---- softmax over (S board moves + 1 pass move), per batch segment -------
    m0 = jnp.maximum(jnp.max(jnp.where(seg0_n, board, -jnp.inf),
                             axis=1, keepdims=True), pass0)    # (NOUT, 1)
    m1 = jnp.maximum(jnp.max(jnp.where(seg0_n, -jnp.inf, board),
                             axis=1, keepdims=True), pass1)
    m_b = jnp.where(seg0_n, m0, m1)                            # (NOUT, 128)
    e_board = jnp.exp(board - m_b)
    e_pass0 = jnp.exp(pass0 - m0)
    e_pass1 = jnp.exp(pass1 - m1)
    e0 = jnp.where(seg0_n, e_board, 0.0)
    sum0 = jnp.sum(e0, axis=1, keepdims=True)
    sum1 = jnp.sum(e_board - e0, axis=1, keepdims=True)
    inv0 = 1.0 / (sum0 + e_pass0)     # exact divide: rows must sum to 1 (1e-5)
    inv1 = 1.0 / (sum1 + e_pass1)
    probs = e_board * jnp.where(seg0_n, inv0, inv1)            # (NOUT, 128)

    # ---- one lane-dense store per batch (pass prob selected into lane S) -----
    row0 = jnp.where(lane_n == s, e_pass0 * inv0, probs)
    out_ref[0] = row0[:, :sp1].astype(out_ref.dtype)
    # Batch 1's board probs live in lanes [S, 2S): half-lane rotate brings them
    # down to lanes [0, S) (shift=S on a 128-lane axis = swap halves).
    probs_b1 = pltpu.roll(probs, shift=s, axis=1)
    row1 = jnp.where(lane_n == s, e_pass1 * inv1, probs_b1)
    out_ref[1] = row1[:, :sp1].astype(out_ref.dtype)


# --------------------------- one-time parameter prep --------------------------
def _fold_bn(gamma, beta, mean, var, eps=EPS):
    scale = gamma / jnp.sqrt(var + eps)
    return scale, beta - mean * scale


def prepare_params(P):
    """Fold eval-mode BatchNorms and pack everything into two lane-dense slabs.

    Called ONCE (outside the per-call jit): hoists all the tiny fold/concat XLA
    ops out of the forward path and collapses 6 parameter DMAs into 2.
    """
    chead = P["pconv_w"].shape[0]
    cin = P["pconv_w"].shape[1]
    nout = P["conv2_w"].shape[0]
    s = P["pass_w"].shape[1] // chead

    bng_scale, bng_shift = _fold_bn(P["bng_gamma"], P["bng_beta"],
                                    P["bng_mean"], P["bng_var"])
    bn2_scale, bn2_shift = _fold_bn(P["bn2_gamma"], P["bn2_beta"],
                                    P["bn2_mean"], P["bn2_var"])

    pw_f = bn2_scale[:, None] * P["pconv_w"]                  # (C, CIN)
    gw_f = bng_scale[:, None] * P["gconv_w"]                  # (C, CIN)
    dw_f = bn2_scale[:, None] * P["dense_w"]                  # (C, 2C)
    p_shift = bn2_scale * (P["pconv_b"] + P["dense_b"]) + bn2_shift
    g_shift = bng_scale * P["gconv_b"] + bng_shift

    rows = 3 * chead + nout
    rows_padded = ((rows + 7) // 8) * 8
    slab = jnp.zeros((rows_padded, 128), jnp.float32)
    slab = slab.at[0:chead, 0:cin].set(pw_f)                  # Pconv (BN2 folded)
    slab = slab.at[chead:2 * chead, 0:cin].set(gw_f)          # Gconv (BNG folded)
    slab = slab.at[0:chead, cin].set(p_shift)
    slab = slab.at[chead:2 * chead, cin].set(g_shift)
    slab = slab.at[2 * chead:3 * chead, 0:2 * chead].set(dw_f)
    slab = slab.at[3 * chead:3 * chead + nout, 0:chead].set(P["conv2_w"])
    slab = slab.at[3 * chead:3 * chead + nout, chead].set(P["pass_b"])

    # PyTorch flattens g as (C,H,W) -> index c*S + s; tile the weights over the
    # two 64-lane batch halves of the folded 128-lane axis.
    pw3 = P["pass_w"].reshape(nout, chead, s)
    pw3_tiled = jnp.concatenate([pw3] * B, axis=-1)           # (NOUT, C, B*S)
    return slab, pw3_tiled


# --------------------------------- wrapper -----------------------------------
@jax.jit
def policy_head_pallas(x_nchw, slab, pw3_tiled):
    b, cin, h, w = x_nchw.shape
    s = h * w
    nout = pw3_tiled.shape[0]

    # NCHW -> (CIN, B*S): batch folded onto the 128-wide lane axis (2 KiB move).
    x_k = (x_nchw.astype(jnp.float32)
           .reshape(b, cin, s).transpose(1, 0, 2).reshape(cin, b * s))

    vmem = pl.BlockSpec(memory_space=pltpu.MemorySpace.VMEM)
    return pl.pallas_call(
        policy_head_kernel,
        out_shape=jax.ShapeDtypeStruct((b, nout, s + 1), jnp.float32),
        in_specs=[vmem, vmem, vmem],
        out_specs=vmem,
        cost_estimate=pl.CostEstimate(flops=200_000, transcendentals=260,
                                      bytes_accessed=48 * 1024),
    )(x_k, slab, pw3_tiled)


# ------------------------- pure-JAX reference (NCHW) --------------------------
def reference_forward(x, P):
    def bn(v, gamma, beta, mean, var):
        inv = 1.0 / jnp.sqrt(var + EPS)
        return ((v - mean[None, :, None, None]) * inv[None, :, None, None]
                * gamma[None, :, None, None] + beta[None, :, None, None])

    b = x.shape[0]
    p = jnp.einsum("bchw,oc->bohw", x, P["pconv_w"]) + P["pconv_b"][None, :, None, None]
    g = jax.nn.relu(bn(jnp.einsum("bchw,oc->bohw", x, P["gconv_w"])
                       + P["gconv_b"][None, :, None, None],
                       P["bng_gamma"], P["bng_beta"], P["bng_mean"], P["bng_var"]))
    pooled = jnp.concatenate([g.mean(axis=(2, 3)), g.max(axis=(2, 3))], axis=1)
    biases = pooled @ P["dense_w"].T + P["dense_b"]
    p_biased = p + biases[:, :, None, None]
    h = jax.nn.relu(bn(p_biased, P["bn2_gamma"], P["bn2_beta"],
                       P["bn2_mean"], P["bn2_var"]))
    conv2_out = jnp.einsum("bchw,oc->bohw", h, P["conv2_w"]).reshape(b, NOUT, -1)
    pass_out = g.reshape(b, -1) @ P["pass_w"].T + P["pass_b"]
    logits = jnp.concatenate([conv2_out, pass_out[:, :, None]], axis=2)
    return jax.nn.softmax(logits, axis=2)


# --------------------------------- main ---------------------------------------
def make_params(key):
    ks = jax.random.split(key, 16)
    n = lambda k, shape, s=0.1: (s * jax.random.normal(k, shape)).astype(jnp.float32)
    u = lambda k, shape: jax.random.uniform(k, shape, minval=0.5, maxval=1.5).astype(jnp.float32)
    return {
        "pconv_w": n(ks[0], (CHEAD, CIN)),       "pconv_b": n(ks[1], (CHEAD,)),
        "gconv_w": n(ks[2], (CHEAD, CIN)),       "gconv_b": n(ks[3], (CHEAD,)),
        "bng_gamma": u(ks[4], (CHEAD,)),         "bng_beta": n(ks[5], (CHEAD,)),
        "bng_mean": n(ks[6], (CHEAD,)),          "bng_var": u(ks[7], (CHEAD,)),
        "dense_w": n(ks[8], (CHEAD, 2 * CHEAD)), "dense_b": n(ks[9], (CHEAD,)),
        "bn2_gamma": u(ks[10], (CHEAD,)),        "bn2_beta": n(ks[11], (CHEAD,)),
        "bn2_mean": n(ks[12], (CHEAD,)),         "bn2_var": u(ks[13], (CHEAD,)),
        "conv2_w": n(ks[14], (NOUT, CHEAD)),
        "pass_w": n(ks[15], (NOUT, CHEAD * S), s=0.02),
        "pass_b": jnp.zeros((NOUT,), jnp.float32),
    }


if __name__ == "__main__":
    key = jax.random.PRNGKey(0)
    kx, kp = jax.random.split(key)
    x = jax.random.normal(kx, (B, CIN, H, W), dtype=jnp.float32)
    params = make_params(kp)

    # One-time parameter folding/packing (outside the per-call path).
    slab, pw3_tiled = prepare_params(params)

    out = jax.block_until_ready(policy_head_pallas(x, slab, pw3_tiled))
    ref = jax.block_until_ready(reference_forward(x, params))

    assert out.shape == (B, NOUT, S + 1), out.shape
    assert jnp.allclose(out, ref, rtol=1e-5, atol=1e-5), float(jnp.abs(out - ref).max())
    # softmax rows sum to 1
    assert jnp.allclose(out.sum(axis=2), 1.0, atol=1e-5)
    print("KERNEL_OK")
</pallas_src>

<mosaic_0001>
module attributes {stable_mosaic.version = 11 : i64} {
  func.func @policy_head_kernel(%arg0: memref<4x128xf32, #tpu.memory_space<vmem>>, %arg1: memref<56x128xf32, #tpu.memory_space<vmem>>, %arg2: memref<2x16x128xf32, #tpu.memory_space<vmem>>, %arg3: memref<2x2x65xf32, #tpu.memory_space<vmem>>) attributes {dimension_semantics = [], scalar_prefetch = 0 : i64, scratch_operands = 0 : i64, tpu.core_type = #tpu.core_type<tc>} {
    %c0 = arith.constant 0 : index
    %c0_0 = arith.constant 0 : index
    %0 = vector.load %arg1[%c0, %c0_0] : memref<56x128xf32, #tpu.memory_space<vmem>>, vector<32x4xf32>
    %c0_1 = arith.constant 0 : index
    %c4 = arith.constant 4 : index
    %1 = vector.load %arg1[%c0_1, %c4] : memref<56x128xf32, #tpu.memory_space<vmem>>, vector<16x1xf32>
    %c16 = arith.constant 16 : index
    %c4_2 = arith.constant 4 : index
    %2 = vector.load %arg1[%c16, %c4_2] : memref<56x128xf32, #tpu.memory_space<vmem>>, vector<16x1xf32>
    %c32 = arith.constant 32 : index
    %c0_3 = arith.constant 0 : index
    %3 = vector.load %arg1[%c32, %c0_3] : memref<56x128xf32, #tpu.memory_space<vmem>>, vector<16x32xf32>
    %c48 = arith.constant 48 : index
    %c0_4 = arith.constant 0 : index
    %4 = vector.load %arg1[%c48, %c0_4] : memref<56x128xf32, #tpu.memory_space<vmem>>, vector<2x16xf32>
    %c48_5 = arith.constant 48 : index
    %c16_6 = arith.constant 16 : index
    %5 = vector.load %arg1[%c48_5, %c16_6] : memref<56x128xf32, #tpu.memory_space<vmem>>, vector<2x1xf32>
    %c0_7 = arith.constant 0 : index
    %c0_8 = arith.constant 0 : index
    %6 = vector.load %arg0[%c0_7, %c0_8] : memref<4x128xf32, #tpu.memory_space<vmem>>, vector<4x128xf32>
    %cst = arith.constant dense<0.000000e+00> : vector<32x128xf32>
    %7 = tpu.matmul %0, %6, %cst {dimension_numbers = #tpu.dot_dimension_numbers<[1], [0], [0], [1], [0, 0, 1, 1], [], []>} : vector<32x4xf32>, vector<4x128xf32>, vector<32x128xf32> -> vector<32x128xf32>
    %8 = vector.extract_strided_slice %7 {offsets = [16, 0], sizes = [16, 128], strides = [1, 1]} : vector<32x128xf32> to vector<16x128xf32>
    %9 = vector.broadcast %2 : vector<16x1xf32> to vector<16x128xf32>
    %10 = arith.addf %8, %9 : vector<16x128xf32>
    %cst_9 = arith.constant 0.000000e+00 : f32
    %11 = vector.broadcast %cst_9 : f32 to vector<16x128xf32>
    %12 = arith.maximumf %10, %11 : vector<16x128xf32>
    %13 = tpu.iota {dimensions = array<i32: 1>} : vector<16x128xi32>
    %c64_i32 = arith.constant 64 : i32
    %14 = vector.broadcast %c64_i32 : i32 to vector<16x128xi32>
    %15 = arith.cmpi slt, %13, %14 : vector<16x128xi32>
    %cst_10 = arith.constant 0.000000e+00 : f32
    %16 = vector.broadcast %cst_10 : f32 to vector<16x128xf32>
    %17 = arith.select %15, %12, %16 : vector<16x128xi1>, vector<16x128xf32>
    %18 = arith.subf %12, %17 : vector<16x128xf32>
    %cst_11 = arith.constant dense<0.000000e+00> : vector<16xf32>
    %19 = vector.multi_reduction <add>, %17, %cst_11 [1] : vector<16x128xf32> to vector<16xf32>
    %20 = vector.shape_cast %19 : vector<16xf32> to vector<16x1xf32>
    %cst_12 = arith.constant 1.562500e-02 : f32
    %21 = vector.broadcast %cst_12 : f32 to vector<16x1xf32>
    %22 = arith.mulf %20, %21 : vector<16x1xf32>
    %cst_13 = arith.constant dense<0.000000e+00> : vector<16xf32>
    %23 = vector.multi_reduction <add>, %18, %cst_13 [1] : vector<16x128xf32> to vector<16xf32>
    %24 = vector.shape_cast %23 : vector<16xf32> to vector<16x1xf32>
    %cst_14 = arith.constant 1.562500e-02 : f32
    %25 = vector.broadcast %cst_14 : f32 to vector<16x1xf32>
    %26 = arith.mulf %24, %25 : vector<16x1xf32>
    %cst_15 = arith.constant dense<0xFF800000> : vector<16xf32>
    %27 = vector.multi_reduction <maximumf>, %17, %cst_15 [1] : vector<16x128xf32> to vector<16xf32>
    %28 = vector.shape_cast %27 : vector<16xf32> to vector<16x1xf32>
    %cst_16 = arith.constant dense<0xFF800000> : vector<16xf32>
    %29 = vector.multi_reduction <maximumf>, %18, %cst_16 [1] : vector<16x128xf32> to vector<16xf32>
    %30 = vector.shape_cast %29 : vector<16xf32> to vector<16x1xf32>
    %31 = vector.shape_cast %22 : vector<16x1xf32> to vector<16x1xf32>
    %32 = vector.broadcast %31 : vector<16x1xf32> to vector<16x128xf32>
    %33 = vector.shape_cast %26 : vector<16x1xf32> to vector<16x1xf32>
    %34 = vector.broadcast %33 : vector<16x1xf32> to vector<16x128xf32>
    %35 = arith.select %15, %32, %34 : vector<16x128xi1>, vector<16x128xf32>
    %36 = vector.shape_cast %28 : vector<16x1xf32> to vector<16x1xf32>
    %37 = vector.broadcast %36 : vector<16x1xf32> to vector<16x128xf32>
    %38 = vector.shape_cast %30 : vector<16x1xf32> to vector<16x1xf32>
    %39 = vector.broadcast %38 : vector<16x1xf32> to vector<16x128xf32>
    %40 = arith.select %15, %37, %39 : vector<16x128xi1>, vector<16x128xf32>
    %41 = tpu.concatenate %35, %40 in 0 : vector<16x128xf32>, vector<16x128xf32> -> vector<32x128xf32>
    %cst_17 = arith.constant dense<0.000000e+00> : vector<16x128xf32>
    %42 = tpu.matmul %3, %41, %cst_17 {dimension_numbers = #tpu.dot_dimension_numbers<[1], [0], [0], [1], [0, 0, 1, 1], [], []>} : vector<16x32xf32>, vector<32x128xf32>, vector<16x128xf32> -> vector<16x128xf32>
    %43 = vector.extract_strided_slice %7 {offsets = [0, 0], sizes = [16, 128], strides = [1, 1]} : vector<32x128xf32> to vector<16x128xf32>
    %44 = arith.addf %43, %42 : vector<16x128xf32>
    %45 = vector.broadcast %1 : vector<16x1xf32> to vector<16x128xf32>
    %46 = arith.addf %44, %45 : vector<16x128xf32>
    %cst_18 = arith.constant 0.000000e+00 : f32
    %47 = vector.broadcast %cst_18 : f32 to vector<16x128xf32>
    %48 = arith.maximumf %46, %47 : vector<16x128xf32>
    %cst_19 = arith.constant dense<0.000000e+00> : vector<2x128xf32>
    %49 = tpu.matmul %4, %48, %cst_19 {dimension_numbers = #tpu.dot_dimension_numbers<[1], [0], [0], [1], [0, 0, 1, 1], [], []>} : vector<2x16xf32>, vector<16x128xf32>, vector<2x128xf32> -> vector<2x128xf32>
    %c0_20 = arith.constant 0 : index
    %c0_21 = arith.constant 0 : index
    %c0_22 = arith.constant 0 : index
    %50 = vector.load %arg2[%c0_20, %c0_21, %c0_22] : memref<2x16x128xf32, #tpu.memory_space<vmem>>, vector<2x16x128xf32>
    %51 = vector.shape_cast %12 : vector<16x128xf32> to vector<1x16x128xf32>
    %52 = vector.broadcast %51 : vector<1x16x128xf32> to vector<2x16x128xf32>
    %53 = arith.mulf %50, %52 : vector<2x16x128xf32>
    %cst_23 = arith.constant dense<0.000000e+00> : vector<2x128xf32>
    %54 = vector.multi_reduction <add>, %53, %cst_23 [1] : vector<2x16x128xf32> to vector<2x128xf32>
    %55 = tpu.iota {dimensions = array<i32: 1>} : vector<2x128xi32>
    %c64_i32_24 = arith.constant 64 : i32
    %56 = vector.broadcast %c64_i32_24 : i32 to vector<2x128xi32>
    %57 = arith.cmpi slt, %55, %56 : vector<2x128xi32>
    %cst_25 = arith.constant 0.000000e+00 : f32
    %58 = vector.broadcast %cst_25 : f32 to vector<2x128xf32>
    %59 = arith.select %57, %54, %58 : vector<2x128xi1>, vector<2x128xf32>
    %cst_26 = arith.constant dense<0.000000e+00> : vector<2xf32>
    %60 = vector.multi_reduction <add>, %59, %cst_26 [1] : vector<2x128xf32> to vector<2xf32>
    %61 = vector.shape_cast %60 : vector<2xf32> to vector<2x1xf32>
    %62 = arith.addf %61, %5 : vector<2x1xf32>
    %63 = arith.subf %54, %59 : vector<2x128xf32>
    %cst_27 = arith.constant dense<0.000000e+00> : vector<2xf32>
    %64 = vector.multi_reduction <add>, %63, %cst_27 [1] : vector<2x128xf32> to vector<2xf32>
    %65 = vector.shape_cast %64 : vector<2xf32> to vector<2x1xf32>
    %66 = arith.addf %65, %5 : vector<2x1xf32>
    %cst_28 = arith.constant 0xFF800000 : f32
    %67 = vector.broadcast %cst_28 : f32 to vector<2x128xf32>
    %68 = arith.select %57, %49, %67 : vector<2x128xi1>, vector<2x128xf32>
    %cst_29 = arith.constant dense<0xFF800000> : vector<2xf32>
    %69 = vector.multi_reduction <maximumf>, %68, %cst_29 [1] : vector<2x128xf32> to vector<2xf32>
    %70 = vector.shape_cast %69 : vector<2xf32> to vector<2x1xf32>
    %71 = arith.maximumf %70, %62 : vector<2x1xf32>
    %cst_30 = arith.constant 0xFF800000 : f32
    %72 = vector.broadcast %cst_30 : f32 to vector<2x128xf32>
    %73 = arith.select %57, %72, %49 : vector<2x128xi1>, vector<2x128xf32>
    %cst_31 = arith.constant dense<0xFF800000> : vector<2xf32>
    %74 = vector.multi_reduction <maximumf>, %73, %cst_31 [1] : vector<2x128xf32> to vector<2xf32>
    %75 = vector.shape_cast %74 : vector<2xf32> to vector<2x1xf32>
    %76 = arith.maximumf %75, %66 : vector<2x1xf32>
    %77 = vector.shape_cast %71 : vector<2x1xf32> to vector<2x1xf32>
    %78 = vector.broadcast %77 : vector<2x1xf32> to vector<2x128xf32>
    %79 = vector.shape_cast %76 : vector<2x1xf32> to vector<2x1xf32>
    %80 = vector.broadcast %79 : vector<2x1xf32> to vector<2x128xf32>
    %81 = arith.select %57, %78, %80 : vector<2x128xi1>, vector<2x128xf32>
    %82 = arith.subf %49, %81 : vector<2x128xf32>
    %83 = math.exp %82 : vector<2x128xf32>
    %84 = arith.subf %62, %71 : vector<2x1xf32>
    %85 = math.exp %84 : vector<2x1xf32>
    %86 = arith.subf %66, %76 : vector<2x1xf32>
    %87 = math.exp %86 : vector<2x1xf32>
    %cst_32 = arith.constant 0.000000e+00 : f32
    %88 = vector.broadcast %cst_32 : f32 to vector<2x128xf32>
    %89 = arith.select %57, %83, %88 : vector<2x128xi1>, vector<2x128xf32>
    %cst_33 = arith.constant dense<0.000000e+00> : vector<2xf32>
    %90 = vector.multi_reduction <add>, %89, %cst_33 [1] : vector<2x128xf32> to vector<2xf32>
    %91 = vector.shape_cast %90 : vector<2xf32> to vector<2x1xf32>
    %92 = arith.subf %83, %89 : vector<2x128xf32>
    %cst_34 = arith.constant dense<0.000000e+00> : vector<2xf32>
    %93 = vector.multi_reduction <add>, %92, %cst_34 [1] : vector<2x128xf32> to vector<2xf32>
    %94 = vector.shape_cast %93 : vector<2xf32> to vector<2x1xf32>
    %95 = arith.addf %91, %85 : vector<2x1xf32>
    %cst_35 = arith.constant 1.000000e+00 : f32
    %96 = vector.broadcast %cst_35 : f32 to vector<2x1xf32>
    %97 = arith.divf %96, %95 : vector<2x1xf32>
    %98 = arith.addf %94, %87 : vector<2x1xf32>
    %cst_36 = arith.constant 1.000000e+00 : f32
    %99 = vector.broadcast %cst_36 : f32 to vector<2x1xf32>
    %100 = arith.divf %99, %98 : vector<2x1xf32>
    %101 = vector.shape_cast %97 : vector<2x1xf32> to vector<2x1xf32>
    %102 = vector.broadcast %101 : vector<2x1xf32> to vector<2x128xf32>
    %103 = vector.shape_cast %100 : vector<2x1xf32> to vector<2x1xf32>
    %104 = vector.broadcast %103 : vector<2x1xf32> to vector<2x128xf32>
    %105 = arith.select %57, %102, %104 : vector<2x128xi1>, vector<2x128xf32>
    %106 = arith.mulf %83, %105 : vector<2x128xf32>
    %c64_i32_37 = arith.constant 64 : i32
    %107 = vector.broadcast %c64_i32_37 : i32 to vector<2x128xi32>
    %108 = arith.cmpi eq, %55, %107 : vector<2x128xi32>
    %109 = arith.mulf %85, %97 : vector<2x1xf32>
    %110 = vector.shape_cast %109 : vector<2x1xf32> to vector<2x1xf32>
    %111 = vector.broadcast %110 : vector<2x1xf32> to vector<2x128xf32>
    %112 = arith.select %108, %111, %106 : vector<2x128xi1>, vector<2x128xf32>
    %113 = vector.extract_strided_slice %112 {offsets = [0, 0], sizes = [2, 65], strides = [1, 1]} : vector<2x128xf32> to vector<2x65xf32>
    %c0_38 = arith.constant 0 : index
    %c0_39 = arith.constant 0 : index
    %c0_40 = arith.constant 0 : index
    %114 = vector.load %arg3[%c0_38, %c0_39, %c0_40] : memref<2x2x65xf32, #tpu.memory_space<vmem>>, vector<1x2x65xf32>
    %115 = vector.shape_cast %114 : vector<1x2x65xf32> to vector<2x65xf32>
    %116 = vector.shape_cast %113 : vector<2x65xf32> to vector<1x2x65xf32>
    tpu.vector_store %arg3[%c0_38, %c0_39, %c0_40], %116 {strides = array<i32>} : memref<2x2x65xf32, #tpu.memory_space<vmem>>, vector<1x2x65xf32>,
    %c64_i32_41 = arith.constant 64 : i32
    %117 = tpu.dynamic_rotate %106 by %c64_i32_41 dim 1 : vector<2x128xf32>, i32 -> vector<2x128xf32>
    %c64_i32_42 = arith.constant 64 : i32
    %118 = vector.broadcast %c64_i32_42 : i32 to vector<2x128xi32>
    %119 = arith.cmpi eq, %55, %118 : vector<2x128xi32>
    %120 = arith.mulf %87, %100 : vector<2x1xf32>
    %121 = vector.shape_cast %120 : vector<2x1xf32> to vector<2x1xf32>
    %122 = vector.broadcast %121 : vector<2x1xf32> to vector<2x128xf32>
    %123 = arith.select %119, %122, %117 : vector<2x128xi1>, vector<2x128xf32>
    %124 = vector.extract_strided_slice %123 {offsets = [0, 0], sizes = [2, 65], strides = [1, 1]} : vector<2x128xf32> to vector<2x65xf32>
    %c1 = arith.constant 1 : index
    %c0_43 = arith.constant 0 : index
    %c0_44 = arith.constant 0 : index
    %125 = vector.load %arg3[%c1, %c0_43, %c0_44] : memref<2x2x65xf32, #tpu.memory_space<vmem>>, vector<1x2x65xf32>
    %126 = vector.shape_cast %125 : vector<1x2x65xf32> to vector<2x65xf32>
    %127 = vector.shape_cast %124 : vector<2x65xf32> to vector<1x2x65xf32>
    tpu.vector_store %arg3[%c1, %c0_43, %c0_44], %127 {strides = array<i32>} : memref<2x2x65xf32, #tpu.memory_space<vmem>>, vector<1x2x65xf32>,
    return
  }
}

</mosaic_0001>

<llo_original>
// kernel: policy_head_pallas.1
$region0: #{policy_head_pallas.1}
  #allocation0 [shape = 'u32[]', space=smem, size = 0x4, offset = 0x4, fixed_abs, tag = 'smem constant byte address 0x4 - core index']
  #allocation1 [shape = 'u32[144,128]{1,0:T(1,128)}', space=vmem, size = 0x12000, scoped, tag = 'internal scratch']
  %s0 = inlined_call_operand.vmem [shape: f32[4,128], index: 0, kind: input, shape index: {}]
  %s1 = inlined_call_operand.vmem [shape: f32[56,128], index: 1, kind: input, shape index: {}]
  %s2 = inlined_call_operand.vmem [shape: f32[2,16,128], index: 2, kind: input, shape index: {}]
  %s3 = inlined_call_operand.hbm [shape: f32[2,2,65], index: 3, kind: output, shape index: {}]
  %s4 = sld [smem:[#allocation0]]
  $region22: #{policy_head_pallas.1} parent=0
    _
  %s6 = ssub.s32 1, %s4
  %s7 = scalar_select 0, %s6, %s4
  $region1: #{policy_head_pallas.1} parent=0
    #allocation2 [shape = 'u8[2048]{0}', space=vmem, size = 0x800, scoped, tag = 'output window, operand 0, single buffered']
    #allocation3 [shape = 's32[1]{0}', space=sflag, size = 0x4, scoped, tag = 'scoped memory for policy_head_pallas.1']
    %8 = vsyncpa [#allocation3], 0
    // Predicated region
    $region2: #{policy_head_pallas.1} parent=1 // pred_check
      _
    $region3: #{policy_head_pallas.1} parent=1 // pred_check_branch
      %10 = sbr.rel (0) target = $region5
    $region4: #{policy_head_pallas.1} parent=1 // pred_region
      _
    $region5: #{policy_head_pallas.1} parent=1 // pred_fallthru
      _
    // Predicated region
    $region6: #{policy_head_pallas.1} parent=1 // pred_check
      _
    $region7: #{policy_head_pallas.1} parent=1 // pred_check_branch
      %12 = sbr.rel (0) target = $region9
    $region8: #{policy_head_pallas.1} parent=1 // pred_region
      _
    $region9: #{policy_head_pallas.1} parent=1 // pred_fallthru
      _
    // Predicated region
    $region10: #{policy_head_pallas.1} parent=1 // pred_check
      _
    $region11: #{policy_head_pallas.1} parent=1 // pred_check_branch
      %14 = sbr.rel (0) target = $region13
    $region12: #{policy_head_pallas.1} parent=1 // pred_region
      _
    $region13: #{policy_head_pallas.1} parent=1 // pred_fallthru
      _
    %v15 = vld [vmem:[%s1] sm:$0xff]
    %v16 = vld [vmem:[%s1 + $0x8] sm:$0xff]
    %v17 = vld [vmem:[%s1 + $0x10] sm:$0xff]
    %v18 = vld [vmem:[%s1 + $0x18] sm:$0xff]
    %v19 = vld [vmem:[%s1 + $0x20] sm:$0xff]
    %v20 = vld [vmem:[%s1 + $0x28] sm:$0xff]
    %v21 = vld [vmem:[%s1 + $0x30] sm:$0x3]
    %v22 = vld [vmem:[%s0] sm:$0xf]
    %vm23 = vcmask 31744
    %v25 = vsel %vm23, %v15, 0
    %v28 = vsel %vm23, %v16, 0
    %v31 = vsel %vm23, %v17, 0
    %v34 = vsel %vm23, %v18, 0
    %vm36 = vcmask 1043456
    %v38 = vsel %vm36, %v22, 0
    %40 = vmatprep.subr.mxu0 0.0
    %41 = vmatpush1.msra.mxu0 0.0
    %42 = vmatprep.subr.mxu0 0.0
    %43 = vmatpush1.msra.mxu0 0.0
    %44 = vmatprep.subr.mxu0 0.0
    %45 = vmatpush1.msra.mxu0 0.0
    %46 = vmatprep.subr.mxu0 0.0
    %47 = vmatpush1.msra.mxu0 0.0
    %48 = vmatprep.subr.mxu0 0.0
    %49 = vmatpush1.msra.mxu0 0.0
    %50 = vmatprep.subr.mxu0 0.0
    %51 = vmatpush1.msra.mxu0 0.0
    %52 = vmatprep.subr.mxu0 0.0
    %53 = vmatpush1.msra.mxu0 0.0
    %54 = vmatprep.subr.mxu0 0.0
    %55 = vmatpush1.msra.mxu0 0.0
    %56 = vmatprep.subr.mxu0 0.0
    %57 = vmatpush1.msra.mxu0 0.0
    %58 = vmatprep.subr.mxu0 0.0
    %59 = vmatpush1.msra.mxu0 0.0
    %60 = vmatprep.subr.mxu0 0.0
    %61 = vmatpush1.msra.mxu0 0.0
    %62 = vmatprep.subr.mxu0 0.0
    %63 = vmatpush1.msra.mxu0 0.0
    %64 = vmatprep.subr.mxu0 0.0
    %65 = vmatpush1.msra.mxu0 0.0
    %66 = vmatprep.subr.mxu0 0.0
    %67 = vmatpush1.msra.mxu0 0.0
    %68 = vmatprep.subr.mxu0 0.0
    %69 = vmatpush1.msra.mxu0 0.0
    %70 = vmatprep.subr.mxu0 0.0
    %71 = vmatpush1.msra.mxu0 %v38
    %72 = vmatprep.subr.mxu0 0.0
    %73 = vmatpush2.msra.mxu0 0.0
    %74 = vmatprep.subr.mxu0 0.0
    %75 = vmatpush2.msra.mxu0 0.0
    %76 = vmatprep.subr.mxu0 0.0
    %77 = vmatpush2.msra.mxu0 0.0
    %78 = vmatprep.subr.mxu0 0.0
    %79 = vmatpush2.msra.mxu0 0.0
    %80 = vmatprep.subr.mxu0 0.0
    %81 = vmatpush2.msra.mxu0 0.0
    %82 = vmatprep.subr.mxu0 0.0
    %83 = vmatpush2.msra.mxu0 0.0
    %84 = vmatprep.subr.mxu0 0.0
    %85 = vmatpush2.msra.mxu0 0.0
    %86 = vmatprep.subr.mxu0 0.0
    %87 = vmatpush2.msra.mxu0 0.0
    %88 = vmatprep.subr.mxu0 0.0
    %89 = vmatpush2.msra.mxu0 0.0
    %90 = vmatprep.subr.mxu0 0.0
    %91 = vmatpush2.msra.mxu0 0.0
    %92 = vmatprep.subr.mxu0 0.0
    %93 = vmatpush2.msra.mxu0 0.0
    %94 = vmatprep.subr.mxu0 0.0
    %95 = vmatpush2.msra.mxu0 0.0
    %96 = vmatprep.subr.mxu0 0.0
    %97 = vmatpush2.msra.mxu0 0.0
    %98 = vmatprep.subr.mxu0 0.0
    %99 = vmatpush2.msra.mxu0 0.0
    %100 = vmatprep.subr.mxu0 0.0
    %101 = vmatpush2.msra.mxu0 0.0
    %102 = vmatprep.subr.mxu0 0.0
    %103 = vmatpush2.msra.mxu0 0.0
    %104 = vmatprep.mubr.f32.mxu0 0.0
    %105 = vmatmul.mubr.f32.gmra.mxu0 %v25
    %v106 = vpop.f32.mrf.mxu0
    %v107 = vadd.f32 0.0, %v106
    %v108 = vpop.f32.mrf.mxu0
    %109 = vmatprep.mubr.f32.mxu0 0.0
    %110 = vmatmul.mubr.f32.gmra.mxu0 %v28
    %v111 = vpop.f32.mrf.mxu0
    %v112 = vadd.f32 0.0, %v111
    %v113 = vpop.f32.mrf.mxu0
    %114 = vmatprep.mubr.f32.mxu0 0.0
    %115 = vmatmul.mubr.f32.gmra.mxu0 %v31
    %v116 = vpop.f32.mrf.mxu0
    %v117 = vadd.f32 0.0, %v116
    %v118 = vpop.f32.mrf.mxu0
    %119 = vmatprep.mubr.f32.mxu0 0.0
    %120 = vmatmul.mubr.f32.gmra.mxu0 %v34
    %v121 = vpop.f32.mrf.mxu0
    %v122 = vadd.f32 0.0, %v121
    %v123 = vpop.f32.mrf.mxu0
    %124 = vdwg.mxu0
    %125 = vset.pattern.permute.xlu0 4
    %126 = vperm.xlu0 %125, %v17
    %v127 = vpop.permute.xlu0 %126
    %129 = vset.pattern.permute.xlu0 4
    %130 = vperm.xlu0 %129, %v18
    %v131 = vpop.permute.xlu0 %130
    %v133 = vadd.f32 %v117, %v127
    %v134 = vadd.f32 %v122, %v131
    %v135 = vmax.f32 %v133, 0.0
    %v136 = vmax.f32 %v134, 0.0
    %v137 = vlaneseq
    %v138 = vand.u32 %v137, 127
    %vm139 = vcmp.lt.s32.totalorder %v138, 64
    %v140 = vsel %vm139, %v135, 0.0
    %v141 = vsel %vm139, %v136, 0.0
    %v142 = vsub.f32 %v135, %v140
    %v143 = vsub.f32 %v136, %v141
    %144 = vadd.xlane.f32.xlu0 %v140
    %v145 = vpop.xlane.xlu0 %144
    %146 = vadd.xlane.f32.xlu0 %v141
    %v147 = vpop.xlane.xlu0 %146
    %v148 = vmul.f32 %v145, 0.015625
    %v149 = vmul.f32 %v147, 0.015625
    %150 = vadd.xlane.f32.xlu0 %v142
    %v151 = vpop.xlane.xlu0 %150
    %152 = vadd.xlane.f32.xlu0 %v143
    %v153 = vpop.xlane.xlu0 %152
    %v154 = vmul.f32 %v151, 0.015625
    %v155 = vmul.f32 %v153, 0.015625
    %156 = vmax.xlane.f32.xlu0 %v140
    %v157 = vpop.xlane.xlu0 %156
    %158 = vmax.xlane.f32.xlu0 %v141
    %v159 = vpop.xlane.xlu0 %158
    %160 = vmax.xlane.f32.xlu0 %v142
    %v161 = vpop.xlane.xlu0 %160
    %162 = vmax.xlane.f32.xlu0 %v143
    %v163 = vpop.xlane.xlu0 %162
    %v164 = vsel %vm139, %v148, %v154
    %v165 = vsel %vm139, %v149, %v155
    %v166 = vsel %vm139, %v157, %v161
    %v167 = vsel %vm139, %v159, %v163
    %vm168 = vcmask 261120
    %v170 = vsel %vm168, %v19, 0
    %v173 = vsel %vm168, %v20, 0
    %175 = vmatprep.subr.mxu0 0.0
    %176 = vmatpush1.msra.mxu0 0.0
    %177 = vmatprep.subr.mxu0 0.0
    %178 = vmatpush1.msra.mxu0 0.0
    %179 = vmatprep.subr.mxu0 0.0
    %180 = vmatpush1.msra.mxu0 0.0
    %181 = vmatprep.subr.mxu0 0.0
    %182 = vmatpush1.msra.mxu0 0.0
    %183 = vmatprep.subr.mxu0 0.0
    %184 = vmatpush1.msra.mxu0 0.0
    %185 = vmatprep.subr.mxu0 0.0
    %186 = vmatpush1.msra.mxu0 0.0
    %187 = vmatprep.subr.mxu0 0.0
    %188 = vmatpush1.msra.mxu0 0.0
    %189 = vmatprep.subr.mxu0 0.0
    %190 = vmatpush1.msra.mxu0 0.0
    %191 = vmatprep.subr.mxu0 0.0
    %192 = vmatpush1.msra.mxu0 0.0
    %193 = vmatprep.subr.mxu0 0.0
    %194 = vmatpush1.msra.mxu0 0.0
    %195 = vmatprep.subr.mxu0 0.0
    %196 = vmatpush1.msra.mxu0 0.0
    %197 = vmatprep.subr.mxu0 0.0
    %198 = vmatpush1.msra.mxu0 0.0
    %199 = vmatprep.subr.mxu0 0.0
    %200 = vmatpush1.msra.mxu0 %v167
    %201 = vmatprep.subr.mxu0 0.0
    %202 = vmatpush1.msra.mxu0 %v166
    %203 = vmatprep.subr.mxu0 0.0
    %204 = vmatpush1.msra.mxu0 %v165
    %205 = vmatprep.subr.mxu0 0.0
    %206 = vmatpush1.msra.mxu0 %v164
    %207 = vmatprep.subr.mxu0 0.0
    %208 = vmatpush2.msra.mxu0 0.0
    %209 = vmatprep.subr.mxu0 0.0
    %210 = vmatpush2.msra.mxu0 0.0
    %211 = vmatprep.subr.mxu0 0.0
    %212 = vmatpush2.msra.mxu0 0.0
    %213 = vmatprep.subr.mxu0 0.0
    %214 = vmatpush2.msra.mxu0 0.0
    %215 = vmatprep.subr.mxu0 0.0
    %216 = vmatpush2.msra.mxu0 0.0
    %217 = vmatprep.subr.mxu0 0.0
    %218 = vmatpush2.msra.mxu0 0.0
    %219 = vmatprep.subr.mxu0 0.0
    %220 = vmatpush2.msra.mxu0 0.0
    %221 = vmatprep.subr.mxu0 0.0
    %222 = vmatpush2.msra.mxu0 0.0
    %223 = vmatprep.subr.mxu0 0.0
    %224 = vmatpush2.msra.mxu0 0.0
    %225 = vmatprep.subr.mxu0 0.0
    %226 = vmatpush2.msra.mxu0 0.0
    %227 = vmatprep.subr.mxu0 0.0
    %228 = vmatpush2.msra.mxu0 0.0
    %229 = vmatprep.subr.mxu0 0.0
    %230 = vmatpush2.msra.mxu0 0.0
    %231 = vmatprep.subr.mxu0 0.0
    %232 = vmatpush2.msra.mxu0 0.0
    %233 = vmatprep.subr.mxu0 0.0
    %234 = vmatpush2.msra.mxu0 0.0
    %235 = vmatprep.subr.mxu0 0.0
    %236 = vmatpush2.msra.mxu0 0.0
    %237 = vmatprep.subr.mxu0 0.0
    %238 = vmatpush2.msra.mxu0 0.0
    %239 = vmatprep.mubr.f32.mxu0 0.0
    %240 = vmatmul.mubr.f32.gmra.mxu0 %v170
    %v241 = vpop.f32.mrf.mxu0
    %v242 = vadd.f32 0.0, %v241
    %v243 = vpop.f32.mrf.mxu0
    %244 = vmatprep.mubr.f32.mxu0 0.0
    %245 = vmatmul.mubr.f32.gmra.mxu0 %v173
    %v246 = vpop.f32.mrf.mxu0
    %v247 = vadd.f32 0.0, %v246
    %v248 = vpop.f32.mrf.mxu0
    %249 = vdwg.mxu0
    %v250 = vadd.f32 %v107, %v242
    %v251 = vadd.f32 %v112, %v247
    %252 = vset.pattern.permute.xlu0 4
    %253 = vperm.xlu0 %252, %v15
    %v254 = vpop.permute.xlu0 %253
    %256 = vset.pattern.permute.xlu0 4
    %257 = vperm.xlu0 %256, %v16
    %v258 = vpop.permute.xlu0 %257
    %v260 = vadd.f32 %v250, %v254
    %v261 = vadd.f32 %v251, %v258
    %v262 = vmax.f32 %v260, 0.0
    %v263 = vmax.f32 %v261, 0.0
    %vm264 = vcmask 130048
    %v266 = vsel %vm264, %v21, 0
    %268 = vmatprep.subr.mxu0 0.0
    %269 = vmatpush1.msra.mxu0 0.0
    %270 = vmatprep.subr.mxu0 0.0
    %271 = vmatpush1.msra.mxu0 0.0
    %272 = vmatprep.subr.mxu0 0.0
    %273 = vmatpush1.msra.mxu0 0.0
    %274 = vmatprep.subr.mxu0 0.0
    %275 = vmatpush1.msra.mxu0 0.0
    %276 = vmatprep.subr.mxu0 0.0
    %277 = vmatpush1.msra.mxu0 0.0
    %278 = vmatprep.subr.mxu0 0.0
    %279 = vmatpush1.msra.mxu0 0.0
    %280 = vmatprep.subr.mxu0 0.0
    %281 = vmatpush1.msra.mxu0 0.0
    %282 = vmatprep.subr.mxu0 0.0
    %283 = vmatpush1.msra.mxu0 0.0
    %284 = vmatprep.subr.mxu0 0.0
    %285 = vmatpush1.msra.mxu0 0.0
    %286 = vmatprep.subr.mxu0 0.0
    %287 = vmatpush1.msra.mxu0 0.0
    %288 = vmatprep.subr.mxu0 0.0
    %289 = vmatpush1.msra.mxu0 0.0
    %290 = vmatprep.subr.mxu0 0.0
    %291 = vmatpush1.msra.mxu0 0.0
    %292 = vmatprep.subr.mxu0 0.0
    %293 = vmatpush1.msra.mxu0 0.0
    %294 = vmatprep.subr.mxu0 0.0
    %295 = vmatpush1.msra.mxu0 0.0
    %296 = vmatprep.subr.mxu0 0.0
    %297 = vmatpush1.msra.mxu0 %v263
    %298 = vmatprep.subr.mxu0 0.0
    %299 = vmatpush1.msra.mxu0 %v262
    %300 = vmatprep.subr.mxu0 0.0
    %301 = vmatpush2.msra.mxu0 0.0
    %302 = vmatprep.subr.mxu0 0.0
    %303 = vmatpush2.msra.mxu0 0.0
    %304 = vmatprep.subr.mxu0 0.0
    %305 = vmatpush2.msra.mxu0 0.0
    %306 = vmatprep.subr.mxu0 0.0
    %307 = vmatpush2.msra.mxu0 0.0
    %308 = vmatprep.subr.mxu0 0.0
    %309 = vmatpush2.msra.mxu0 0.0
    %310 = vmatprep.subr.mxu0 0.0
    %311 = vmatpush2.msra.mxu0 0.0
    %312 = vmatprep.subr.mxu0 0.0
    %313 = vmatpush2.msra.mxu0 0.0
    %314 = vmatprep.subr.mxu0 0.0
    %315 = vmatpush2.msra.mxu0 0.0
    %316 = vmatprep.subr.mxu0 0.0
    %317 = vmatpush2.msra.mxu0 0.0
    %318 = vmatprep.subr.mxu0 0.0
    %319 = vmatpush2.msra.mxu0 0.0
    %320 = vmatprep.subr.mxu0 0.0
    %321 = vmatpush2.msra.mxu0 0.0
    %322 = vmatprep.subr.mxu0 0.0
    %323 = vmatpush2.msra.mxu0 0.0
    %324 = vmatprep.subr.mxu0 0.0
    %325 = vmatpush2.msra.mxu0 0.0
    %326 = vmatprep.subr.mxu0 0.0
    %327 = vmatpush2.msra.mxu0 0.0
    %328 = vmatprep.subr.mxu0 0.0
    %329 = vmatpush2.msra.mxu0 0.0
    %330 = vmatprep.subr.mxu0 0.0
    %331 = vmatpush2.msra.mxu0 0.0
    %332 = vmatprep.mubr.f32.mxu0 0.0
    %333 = vmatmul.mubr.f32.gmra.mxu0 %v266
    %v334 = vpop.f32.mrf.mxu0
    %v335 = vadd.f32 0.0, %v334
    %v336 = vpop.f32.mrf.mxu0
    %337 = vdwg.mxu0
    %v338 = vld [vmem:[%s2] sm:$0xff]
    %v339 = vld [vmem:[%s2 + $0x8] sm:$0xff]
    %v340 = vld [vmem:[%s2 + $0x10] sm:$0xff]
    %v341 = vld [vmem:[%s2 + $0x18] sm:$0xff]
    %v342 = vmul.f32 %v338, %v135
    %v343 = vmul.f32 %v339, %v136
    %v344 = vmul.f32 %v340, %v135
    %v345 = vmul.f32 %v341, %v136
    %v346 = vadd.f32 %v342, %v343
    %v347 = vrot.slane %v346, 4
    %v348 = vadd.f32 %v346, %v347
    %v349 = vrot.slane %v348, 2
    %v350 = vadd.f32 %v348, %v349
    %v351 = vrot.slane %v350, 1
    %v352 = vadd.f32 %v350, %v351
    %v353 = vadd.f32 %v344, %v345
    %v354 = vrot.slane %v353, 4
    %v355 = vadd.f32 %v353, %v354
    %v356 = vrot.slane %v355, 2
    %v357 = vadd.f32 %v355, %v356
    %v358 = vrot.slane %v357, 1
    %v359 = vadd.f32 %v357, %v358
    %vm362 = vcmask 1041409
    %v363 = vsel %vm362, %v359, %v352
    %v365 = vsel %vm139, %v363, 0.0
    %vm366 = vcmask 1041408
    %v367 = vsel %vm366, %v365, 0.0
    %368 = vadd.xlane.f32.xlu0 %v367
    %v369 = vpop.xlane.xlu0 %368
    %v370 = vadd.f32 %v369, %v21
    %v372 = vrot.slane %v365, 1
    %v375 = vsub.f32 %v352, %v365
    %v376 = vsub.f32 %v359, %v372
    %v379 = vrot.slane %v376, 7
    %v380 = vsel %vm362, %v379, %v375
    %v382 = vsel %vm366, %v380, 0.0
    %383 = vadd.xlane.f32.xlu0 %v382
    %v384 = vpop.xlane.xlu0 %383
    %v385 = vadd.f32 %v384, %v21
    %v386 = vsel %vm139, %v335, -inf
    %v387 = vsel %vm366, %v386, -inf
    %388 = vmax.xlane.f32.xlu0 %v387
    %v389 = vpop.xlane.xlu0 %388
    %v390 = vmax.f32 %v389, %v370
    %v391 = vsel %vm139, -inf, %v335
    %v392 = vsel %vm366, %v391, -inf
    %393 = vmax.xlane.f32.xlu0 %v392
    %v394 = vpop.xlane.xlu0 %393
    %v395 = vmax.f32 %v394, %v385
    %397 = vset.pattern.permute.xlu0 16
    %398 = vperm.xlu0 %397, %v390
    %v399 = vpop.permute.xlu0 %398
    %402 = vset.pattern.permute.xlu0 16
    %403 = vperm.xlu0 %402, %v395
    %v404 = vpop.permute.xlu0 %403
    %v406 = vsel %vm139, %v399, %v404
    %v407 = vsub.f32 %v335, %v406
    %v408 = vmul.f32 %v407, 1.442695
    %v409 = vpow.pop %v408
    %v410 = vsub.f32 %v370, %v390
    %v411 = vmul.f32 %v410, 1.442695
    %v412 = vpow.pop %v411
    %v413 = vsub.f32 %v385, %v395
    %v414 = vmul.f32 %v413, 1.442695
    %v415 = vpow.pop %v414
    %v416 = vsel %vm139, %v409, 0.0
    %v417 = vsel %vm366, %v416, 0.0
    %418 = vadd.xlane.f32.xlu0 %v417
    %v419 = vpop.xlane.xlu0 %418
    %v420 = vsub.f32 %v409, %v416
    %v421 = vsel %vm366, %v420, 0.0
    %422 = vadd.xlane.f32.xlu0 %v421
    %v423 = vpop.xlane.xlu0 %422
    %v424 = vadd.f32 %v419, %v412
    %v425 = vrcp.pop %v424
    %v426 = vmul.f32 1.0, %v425
    %v427 = vadd.f32 %v423, %v415
    %v428 = vrcp.pop %v427
    %v429 = vmul.f32 1.0, %v428
    %431 = vset.pattern.permute.xlu0 16
    %432 = vperm.xlu0 %431, %v426
    %v433 = vpop.permute.xlu0 %432
    %436 = vset.pattern.permute.xlu0 16
    %437 = vperm.xlu0 %436, %v429
    %v438 = vpop.permute.xlu0 %437
    %v440 = vsel %vm139, %v433, %v438
    %v441 = vmul.f32 %v409, %v440
    %vm442 = vcmp.eq.s32.totalorder %v138, 64
    %v443 = vmul.f32 %v412, %v426
    %445 = vset.pattern.permute.xlu0 16
    %446 = vperm.xlu0 %445, %v443
    %v447 = vpop.permute.xlu0 %446
    %v449 = vsel %vm442, %v447, %v441
    %vm450 = vcmask 525312
    %451 = vst.msk [vmem:[#allocation2] sm:$0x3] %vm450, %v449
    %452 = vrot.lane.b32.xlu0 %v441, 64
    %v453 = vpop.permute.xlu0 %452
    %v454 = vmul.f32 %v415, %v429
    %456 = vset.pattern.permute.xlu0 16
    %457 = vperm.xlu0 %456, %v454
    %v458 = vpop.permute.xlu0 %457
    %v460 = vsel %vm442, %v458, %v453
    %s461 = scalar_lea.vmem [#allocation2], 2
    %462 = vst.msk [vmem:[%s461] sm:$0x3] %vm450, %v460
    // Predicated region
    $region14: #{policy_head_pallas.1} parent=1 // pred_check
      _
    $region15: #{policy_head_pallas.1} parent=1 // pred_check_branch
      %464 = sbr.rel (0) target = $region17
    $region16: #{policy_head_pallas.1} parent=1 // pred_region
      %s466 = ssub.s32 64, 64
      %467 = vsyncadd [#allocation3], %s466
      %s468 = sshll.u32 [#allocation2], 4
      %s469 = int_to_ptr.vmem [resolvable:$true] %s468
      %474 = dma.vmem_to_hbm [thread:$0]  %s469, 64, %s3, [#allocation3], 32, 32, 2
    $region17: #{policy_head_pallas.1} parent=1 // pred_fallthru
      _
    // Predicated region
    $region18: #{policy_head_pallas.1} parent=1 // pred_check
      _
    $region19: #{policy_head_pallas.1} parent=1 // pred_check_branch
      %476 = sbr.rel (0) target = $region21
    $region20: #{policy_head_pallas.1} parent=1 // pred_region
      %477 = dma.done [#allocation3], 64
    $region21: #{policy_head_pallas.1} parent=1 // pred_fallthru
      _
    %478 = vsyncpa [#allocation3], 1

</llo_original>
